<compile_context>
chip_gen: v7x
topology: tpu7x:2x2x1
jax: 0.10.0
libtpu: 0.0.40
codegen_flags: <defaults>
</compile_context>

<pallas_src>
import jax
import jax.numpy as jnp
from jax.experimental import pallas as pl
from jax.experimental.pallas import tpu as pltpu


def mlp_kernel(x_ref, w1_ref, b1_ref, w2_ref, b2_ref, o_ref):
    # x_ref:  (10, TB)  feature-major tile (batch on lanes), f32 or bf16
    # w1_ref: (10, 10)  PyTorch orientation (out_features, in_features)
    # b1_ref: (10, 1)   column bias, broadcasts over lanes
    # w2_ref: (10, 1)   fc2 weight as a column
    # b2_ref: (1, 1)    scalar bias
    # o_ref:  (1, TB)   lane-dense f32 output tile
    x = x_ref[...].astype(jnp.float32)

    # fc1 + ReLU on the MXU: (10,10) @ (10,TB) -> (10,TB), f32 accumulate.
    h = jnp.dot(w1_ref[...], x, preferred_element_type=jnp.float32) + b1_ref[...]
    h = jnp.maximum(h, 0.0)

    # fc2 as VPU multiply + sublane reduce (avoids an N=1 MXU pass).
    y = jnp.sum(h * w2_ref[...], axis=0, keepdims=True) + b2_ref[...]
    o_ref[...] = y.astype(o_ref.dtype)


def simple_nn_forward(x, w1, b1, w2, b2, *, tb_max=131072, x_compute_dtype=None):
    """x: (B, 10) row-major (PyTorch layout). Params in PyTorch shapes:
    w1 (10,10), b1 (10,), w2 (1,10), b2 (1,). Returns (B, 1) float32."""
    B, F = x.shape
    assert F == 10

    x_dtype = x_compute_dtype if x_compute_dtype is not None else x.dtype

    # Batch maps to lanes: pad only up to a multiple of 128 (lane width).
    B_pad = pl.cdiv(B, 128) * 128

    # Largest tile (multiple of 128) capped by tb_max; partial edge block is
    # handled by Pallas, so B_pad need NOT be a multiple of TB.
    TB = max(128, min((int(tb_max) // 128) * 128, B_pad))
    num_steps = pl.cdiv(B_pad, TB)
    # v7x megacore: if one tile would cover a >=256-lane batch, split into two
    # so the "parallel" grid axis feeds both TensorCores.
    if num_steps == 1 and B_pad >= 256:
        TB = pl.cdiv(B_pad, 2 * 128) * 128
        num_steps = pl.cdiv(B_pad, TB)
    grid = (num_steps,)

    # Wrapper layout plumbing: one fused transpose + pad + (optional) cast pass.
    x_t = jnp.pad(x.T.astype(x_dtype), ((0, 0), (0, B_pad - B)))
    w1_f = w1.astype(jnp.float32)
    b1_c = b1.reshape(10, 1).astype(jnp.float32)
    w2_c = w2.reshape(1, 10).T.astype(jnp.float32)   # -> (10, 1)
    b2_c = b2.reshape(1, 1).astype(jnp.float32)

    # VMEM footprint: double-buffered x tile (10 -> 16 sublanes) + f32 output
    # tile (1 -> 8 sublanes) + small resident params.  Set the scoped limit
    # explicitly so v5e's 16 MiB / the 32 MiB defaults never bind; stay well
    # under v7x's 64 MiB physical VMEM.
    itemsize = jnp.dtype(x_dtype).itemsize
    footprint = TB * 2 * (16 * itemsize + 8 * 4) + (1 << 16)
    vmem_limit = int(min(48 * 1024 * 1024,
                         max(32 * 1024 * 1024, footprint + 8 * 1024 * 1024)))

    # Deeper prefetch only when tiles are small and there are several steps
    # (small per-step DMAs are latency-, not bandwidth-bound).
    if TB <= 4096 and num_steps >= 3:
        x_spec = pl.BlockSpec((10, TB), lambda i: (0, i),
                              pipeline_mode=pl.Buffered(3))
    else:
        x_spec = pl.BlockSpec((10, TB), lambda i: (0, i))

    # ~220 flops and ~(10*itemsize + 4) bytes of HBM per row -> memory-bound.
    cost = pl.CostEstimate(
        flops=2 * B_pad * 110,
        transcendentals=0,
        bytes_accessed=B_pad * (10 * itemsize + 4) + (100 + 10 + 10 + 1) * 4,
    )

    out_t = pl.pallas_call(
        mlp_kernel,
        out_shape=jax.ShapeDtypeStruct((1, B_pad), jnp.float32),
        grid=grid,
        in_specs=[
            x_spec,                                    # x tile, batch on lanes
            pl.BlockSpec((10, 10), lambda i: (0, 0)),  # w1 resident
            pl.BlockSpec((10, 1), lambda i: (0, 0)),   # b1 resident
            pl.BlockSpec((10, 1), lambda i: (0, 0)),   # w2 resident
            pl.BlockSpec((1, 1), lambda i: (0, 0)),    # b2 resident
        ],
        out_specs=pl.BlockSpec((1, TB), lambda i: (0, i)),
        compiler_params=pltpu.CompilerParams(
            dimension_semantics=("parallel",),          # megacore sharding
            vmem_limit_bytes=vmem_limit,
        ),
        cost_estimate=cost,
    )(x_t, w1_f, b1_c, w2_c, b2_c)

    # Strip lane padding; output stays f32 for parity with the f32 reference.
    return out_t[0, :B].reshape(B, 1)


def init_params(key):
    """Deterministic init mimicking nn.Linear (PyTorch (out, in) layout)."""
    k1, k2, k3, k4 = jax.random.split(key, 4)
    bound = 1.0 / jnp.sqrt(10.0)
    w1 = jax.random.uniform(k1, (10, 10), jnp.float32, -bound, bound)
    b1 = jax.random.uniform(k2, (10,), jnp.float32, -bound, bound)
    w2 = jax.random.uniform(k3, (1, 10), jnp.float32, -bound, bound)
    b2 = jax.random.uniform(k4, (1,), jnp.float32, -bound, bound)
    return w1, b1, w2, b2


if __name__ == "__main__":
    key = jax.random.PRNGKey(0)
    k_params, k_x1, k_x2 = jax.random.split(key, 3)
    w1, b1, w2, b2 = init_params(k_params)

    # Pure-JAX elementwise reference (PyTorch semantics, exact f32, no MXU).
    def ref_fwd(xx):
        h = jnp.maximum((xx[:, None, :] * w1[None, :, :]).sum(-1) + b1, 0.0)
        return (h * w2[0][None, :]).sum(-1, keepdims=True) + b2

    # Small batch: single tile.
    x_small = jax.random.normal(k_x1, (8, 10), jnp.float32)
    out_small = jax.block_until_ready(simple_nn_forward(x_small, w1, b1, w2, b2))
    assert out_small.shape == (8, 1)
    assert jnp.allclose(out_small, ref_fwd(x_small), atol=1e-2, rtol=1e-2)

    # Larger batch: multi-step grid (v7x 2-TC split) with a partial edge block.
    x_big = jax.random.normal(k_x2, (300, 10), jnp.float32)
    out_big = jax.block_until_ready(simple_nn_forward(x_big, w1, b1, w2, b2))
    assert out_big.shape == (300, 1)
    assert jnp.allclose(out_big, ref_fwd(x_big), atol=1e-2, rtol=1e-2)

    # bf16-fed x (halves x's HBM traffic); accumulation and output stay f32.
    out_bf16 = jax.block_until_ready(
        simple_nn_forward(x_big, w1, b1, w2, b2, x_compute_dtype=jnp.bfloat16))
    ref_bf16 = ref_fwd(x_big.astype(jnp.bfloat16).astype(jnp.float32))
    assert out_bf16.shape == (300, 1)
    assert jnp.allclose(out_bf16, ref_bf16, atol=1e-2, rtol=1e-2)

    print("KERNEL_OK")
</pallas_src>

<mosaic_0001>
module attributes {stable_mosaic.version = 11 : i64} {
  func.func @mlp_kernel(%arg0: i32, %arg1: memref<10x128xf32, #tpu.memory_space<vmem>>, %arg2: memref<10x10xf32, #tpu.memory_space<vmem>>, %arg3: memref<10x1xf32, #tpu.memory_space<vmem>>, %arg4: memref<10x1xf32, #tpu.memory_space<vmem>>, %arg5: memref<1x1xf32, #tpu.memory_space<vmem>>, %arg6: memref<1x128xf32, #tpu.memory_space<vmem>>) attributes {dimension_semantics = [#tpu.dimension_semantics<parallel>], iteration_bounds = array<i64: 1>, scalar_prefetch = 0 : i64, scratch_operands = 0 : i64, tpu.core_type = #tpu.core_type<tc>, window_params = [{transform_indices = @transform_0, window_bounds = array<i64: 10, 128>}, {pipeline_mode = #tpu.pipeline_mode<synchronous>, transform_indices = @transform_1, window_bounds = array<i64: 10, 10>}, {pipeline_mode = #tpu.pipeline_mode<synchronous>, transform_indices = @transform_2, window_bounds = array<i64: 10, 1>}, {pipeline_mode = #tpu.pipeline_mode<synchronous>, transform_indices = @transform_3, window_bounds = array<i64: 10, 1>}, {pipeline_mode = #tpu.pipeline_mode<synchronous>, transform_indices = @transform_4, window_bounds = array<i64: 1, 1>}, {transform_indices = @transform_5, window_bounds = array<i64: 1, 128>}]} {
    %c0 = arith.constant 0 : index
    %c0_0 = arith.constant 0 : index
    %0 = vector.load %arg1[%c0, %c0_0] : memref<10x128xf32, #tpu.memory_space<vmem>>, vector<10x128xf32>
    %c0_1 = arith.constant 0 : index
    %c0_2 = arith.constant 0 : index
    %1 = vector.load %arg2[%c0_1, %c0_2] : memref<10x10xf32, #tpu.memory_space<vmem>>, vector<10x10xf32>
    %cst = arith.constant dense<0.000000e+00> : vector<10x128xf32>
    %2 = tpu.matmul %1, %0, %cst {dimension_numbers = #tpu.dot_dimension_numbers<[1], [0], [0], [1], [0, 0, 1, 1], [], []>} : vector<10x10xf32>, vector<10x128xf32>, vector<10x128xf32> -> vector<10x128xf32>
    %c0_3 = arith.constant 0 : index
    %c0_4 = arith.constant 0 : index
    %3 = vector.load %arg3[%c0_3, %c0_4] : memref<10x1xf32, #tpu.memory_space<vmem>>, vector<10x1xf32>
    %4 = vector.broadcast %3 : vector<10x1xf32> to vector<10x128xf32>
    %5 = arith.addf %2, %4 : vector<10x128xf32>
    %cst_5 = arith.constant 0.000000e+00 : f32
    %6 = vector.broadcast %cst_5 : f32 to vector<10x128xf32>
    %7 = arith.maximumf %5, %6 : vector<10x128xf32>
    %c0_6 = arith.constant 0 : index
    %c0_7 = arith.constant 0 : index
    %8 = vector.load %arg4[%c0_6, %c0_7] : memref<10x1xf32, #tpu.memory_space<vmem>>, vector<10x1xf32>
    %9 = vector.broadcast %8 : vector<10x1xf32> to vector<10x128xf32>
    %10 = arith.mulf %7, %9 : vector<10x128xf32>
    %cst_8 = arith.constant dense<0.000000e+00> : vector<128xf32>
    %11 = vector.multi_reduction <add>, %10, %cst_8 [0] : vector<10x128xf32> to vector<128xf32>
    %12 = vector.shape_cast %11 : vector<128xf32> to vector<1x128xf32>
    %c0_9 = arith.constant 0 : index
    %c0_10 = arith.constant 0 : index
    %13 = vector.load %arg5[%c0_9, %c0_10] : memref<1x1xf32, #tpu.memory_space<vmem>>, vector<1x1xf32>
    %14 = vector.broadcast %13 : vector<1x1xf32> to vector<1x128xf32>
    %15 = arith.addf %12, %14 : vector<1x128xf32>
    %c0_11 = arith.constant 0 : index
    %c0_12 = arith.constant 0 : index
    %16 = vector.load %arg6[%c0_11, %c0_12] : memref<1x128xf32, #tpu.memory_space<vmem>>, vector<1x128xf32>
    tpu.vector_store %arg6[%c0_11, %c0_12], %15 {strides = array<i32>} : memref<1x128xf32, #tpu.memory_space<vmem>>, vector<1x128xf32>,
    return
  }
  func.func @transform_0(%arg0: i32) -> (i32, i32) {
    %c0_i32 = arith.constant 0 : i32
    %c0_i32_0 = arith.constant 0 : i32
    return %c0_i32, %arg0 : i32, i32
  }
  func.func @transform_1(%arg0: i32) -> (i32, i32) {
    %c0_i32 = arith.constant 0 : i32
    %c0_i32_0 = arith.constant 0 : i32
    %c0_i32_1 = arith.constant 0 : i32
    return %c0_i32, %c0_i32_0 : i32, i32
  }
  func.func @transform_2(%arg0: i32) -> (i32, i32) {
    %c0_i32 = arith.constant 0 : i32
    %c0_i32_0 = arith.constant 0 : i32
    %c0_i32_1 = arith.constant 0 : i32
    return %c0_i32, %c0_i32_0 : i32, i32
  }
  func.func @transform_3(%arg0: i32) -> (i32, i32) {
    %c0_i32 = arith.constant 0 : i32
    %c0_i32_0 = arith.constant 0 : i32
    %c0_i32_1 = arith.constant 0 : i32
    return %c0_i32, %c0_i32_0 : i32, i32
  }
  func.func @transform_4(%arg0: i32) -> (i32, i32) {
    %c0_i32 = arith.constant 0 : i32
    %c0_i32_0 = arith.constant 0 : i32
    %c0_i32_1 = arith.constant 0 : i32
    return %c0_i32, %c0_i32_0 : i32, i32
  }
  func.func @transform_5(%arg0: i32) -> (i32, i32) {
    %c0_i32 = arith.constant 0 : i32
    %c0_i32_0 = arith.constant 0 : i32
    return %c0_i32, %arg0 : i32, i32
  }
}

</mosaic_0001>

<llo_original>
// kernel: tpu_custom_call.1
$region0: #{tpu_custom_call.1}
  #allocation0 [shape = 'u32[]', space=smem, size = 0x4, offset = 0x4, fixed_abs, tag = 'smem constant byte address 0x4 - core index']
  #allocation1 [shape = 'u32[144,128]{1,0:T(1,128)}', space=vmem, size = 0x12000, scoped, tag = 'internal scratch']
  #allocation2 [shape = 'f32[1,1]{1,0:T(1,128)S(1)}', space=vmem, size = 0x200, scoped, tag = 'scoped memory for tpu_custom_call.1']
  %s0 = inlined_call_operand.vmem [shape: f32[10,128], index: 0, kind: input, shape index: {}]
  %s1 = inlined_call_operand.vmem [shape: f32[10,10], index: 1, kind: input, shape index: {}]
  %s2 = inlined_call_operand.vmem [shape: f32[10,1], index: 2, kind: input, shape index: {}]
  %s3 = inlined_call_operand.vmem [shape: f32[10,1], index: 3, kind: input, shape index: {}]
  %s4 = inlined_call_operand.<no memory space> [shape: f32[1,1], index: 4, kind: input, shape index: {}]
  %s5 = inlined_call_operand.hbm [shape: f32[1,128], index: 5, kind: output, shape index: {}]
  %s6 = sld [smem:[#allocation0]]
  $region30: #{tpu_custom_call.1} parent=0
    _
  %s8 = ssub.s32 1, %s6
  %s9 = scalar_select 0, %s8, %s6
  %v10 = vstv %s4
  %11 = vst [vmem:[#allocation2] sm:$0x1] %v10
  $region1: #{tpu_custom_call.1} parent=0
    #allocation3 [shape = 'u8[512]{0}', space=vmem, size = 0x400, scoped, tag = 'output window, operand 0, single buffered']
    #allocation4 [shape = 's32[1]{0}', space=sflag, size = 0x4, scoped, tag = 'scoped memory for tpu_custom_call.1']
    %12 = vsyncpa [#allocation4], 0
    // Predicated region
    $region2: #{tpu_custom_call.1} parent=1 // pred_check
      _
    $region3: #{tpu_custom_call.1} parent=1 // pred_check_branch
      %14 = sbr.rel (0) target = $region5
    $region4: #{tpu_custom_call.1} parent=1 // pred_region
      _
    $region5: #{tpu_custom_call.1} parent=1 // pred_fallthru
      _
    // Predicated region
    $region6: #{tpu_custom_call.1} parent=1 // pred_check
      _
    $region7: #{tpu_custom_call.1} parent=1 // pred_check_branch
      %16 = sbr.rel (0) target = $region9
    $region8: #{tpu_custom_call.1} parent=1 // pred_region
      _
    $region9: #{tpu_custom_call.1} parent=1 // pred_fallthru
      _
    // Predicated region
    $region10: #{tpu_custom_call.1} parent=1 // pred_check
      _
    $region11: #{tpu_custom_call.1} parent=1 // pred_check_branch
      %18 = sbr.rel (0) target = $region13
    $region12: #{tpu_custom_call.1} parent=1 // pred_region
      _
    $region13: #{tpu_custom_call.1} parent=1 // pred_fallthru
      _
    // Predicated region
    $region14: #{tpu_custom_call.1} parent=1 // pred_check
      _
    $region15: #{tpu_custom_call.1} parent=1 // pred_check_branch
      %20 = sbr.rel (0) target = $region17
    $region16: #{tpu_custom_call.1} parent=1 // pred_region
      _
    $region17: #{tpu_custom_call.1} parent=1 // pred_fallthru
      _
    // Predicated region
    $region18: #{tpu_custom_call.1} parent=1 // pred_check
      _
    $region19: #{tpu_custom_call.1} parent=1 // pred_check_branch
      %22 = sbr.rel (0) target = $region21
    $region20: #{tpu_custom_call.1} parent=1 // pred_region
      _
    $region21: #{tpu_custom_call.1} parent=1 // pred_fallthru
      _
    %v23 = vld [vmem:[%s0] sm:$0xff]
    %v24 = vld [vmem:[%s0 + $0x8] sm:$0x3]
    %v25 = vld [vmem:[%s1] sm:$0xff]
    %v26 = vld [vmem:[%s1 + $0x8] sm:$0x3]
    %v27 = vld [vmem:[%s2] sm:$0xff]
    %v28 = vld [vmem:[%s2 + $0x8] sm:$0x3]
    %30 = vset.pattern.permute.xlu0 0
    %31 = vperm.xlu0 %30, %v27
    %v32 = vpop.permute.xlu0 %31
    %35 = vset.pattern.permute.xlu0 0
    %36 = vperm.xlu0 %35, %v28
    %v37 = vpop.permute.xlu0 %36
    %vm39 = vcmask 80896
    %v41 = vsel %vm39, %v25, 0
    %v44 = vsel %vm39, %v26, 0
    %vm46 = vcmask 1041408
    %v48 = vsel %vm46, %v24, 0
    %50 = vmatprep.subr.mxu0 0.0
    %51 = vmatpush1.msra.mxu0 %v23
    %52 = vmatprep.subr.mxu0 0.0
    %53 = vmatpush1.msra.mxu0 %v48
    %54 = vmatprep.subr.mxu0 0.0
    %55 = vmatpush1.msra.mxu0 0.0
    %56 = vmatprep.subr.mxu0 0.0
    %57 = vmatpush1.msra.mxu0 0.0
    %58 = vmatprep.subr.mxu0 0.0
    %59 = vmatpush1.msra.mxu0 0.0
    %60 = vmatprep.subr.mxu0 0.0
    %61 = vmatpush1.msra.mxu0 0.0
    %62 = vmatprep.subr.mxu0 0.0
    %63 = vmatpush1.msra.mxu0 0.0
    %64 = vmatprep.subr.mxu0 0.0
    %65 = vmatpush1.msra.mxu0 0.0
    %66 = vmatprep.subr.mxu0 0.0
    %67 = vmatpush1.msra.mxu0 0.0
    %68 = vmatprep.subr.mxu0 0.0
    %69 = vmatpush1.msra.mxu0 0.0
    %70 = vmatprep.subr.mxu0 0.0
    %71 = vmatpush1.msra.mxu0 0.0
    %72 = vmatprep.subr.mxu0 0.0
    %73 = vmatpush1.msra.mxu0 0.0
    %74 = vmatprep.subr.mxu0 0.0
    %75 = vmatpush1.msra.mxu0 0.0
    %76 = vmatprep.subr.mxu0 0.0
    %77 = vmatpush1.msra.mxu0 0.0
    %78 = vmatprep.subr.mxu0 0.0
    %79 = vmatpush1.msra.mxu0 0.0
    %80 = vmatprep.subr.mxu0 0.0
    %81 = vmatpush1.msra.mxu0 0.0
    %82 = vmatprep.subr.mxu0 0.0
    %83 = vmatpush1.msra.mxu0 0.0
    %84 = vmatprep.subr.mxu0 0.0
    %85 = vmatpush1.msra.mxu0 0.0
    %86 = vmatprep.subr.mxu0 0.0
    %87 = vmatpush1.msra.mxu0 0.0
    %88 = vmatprep.subr.mxu0 0.0
    %89 = vmatpush1.msra.mxu0 0.0
    %90 = vmatprep.subr.mxu0 0.0
    %91 = vmatpush1.msra.mxu0 0.0
    %92 = vmatprep.subr.mxu0 0.0
    %93 = vmatpush1.msra.mxu0 0.0
    %94 = vmatprep.subr.mxu0 0.0
    %95 = vmatpush1.msra.mxu0 0.0
    %96 = vmatprep.subr.mxu0 0.0
    %97 = vmatpush1.msra.mxu0 0.0
    %98 = vmatprep.subr.mxu0 0.0
    %99 = vmatpush1.msra.mxu0 0.0
    %100 = vmatprep.subr.mxu0 0.0
    %101 = vmatpush1.msra.mxu0 0.0
    %102 = vmatprep.subr.mxu0 0.0
    %103 = vmatpush1.msra.mxu0 0.0
    %104 = vmatprep.subr.mxu0 0.0
    %105 = vmatpush1.msra.mxu0 0.0
    %106 = vmatprep.subr.mxu0 0.0
    %107 = vmatpush1.msra.mxu0 0.0
    %108 = vmatprep.subr.mxu0 0.0
    %109 = vmatpush1.msra.mxu0 0.0
    %110 = vmatprep.subr.mxu0 0.0
    %111 = vmatpush1.msra.mxu0 0.0
    %112 = vmatprep.subr.mxu0 0.0
    %113 = vmatpush1.msra.mxu0 0.0
    %114 = vmatprep.mubr.f32.mxu0 0.0
    %115 = vmatmul.mubr.f32.gmra.mrb[0].mxu0 %v41
    %v116 = vpop.f32.mrb[0].mxu0
    %v117 = vadd.f32 %v32, %v116
    %v118 = vpop.f32.mrb[0].mxu0
    %119 = vmatprep.mubr.f32.mxu0 0.0
    %120 = vmatmul.mubr.f32.gmra.mrb[0].mxu0 %v44
    %v121 = vpop.f32.mrb[0].mxu0
    %v122 = vadd.f32 %v37, %v121
    %v123 = vpop.f32.mrb[0].mxu0
    %124 = vdwg.mxu0
    %v125 = vmax.f32 %v117, 0.0
    %v126 = vmax.f32 %v122, 0.0
    %v127 = vld [vmem:[%s3] sm:$0xff]
    %v128 = vld [vmem:[%s3 + $0x8] sm:$0x3]
    %130 = vset.pattern.permute.xlu0 0
    %131 = vperm.xlu0 %130, %v127
    %v132 = vpop.permute.xlu0 %131
    %135 = vset.pattern.permute.xlu0 0
    %136 = vperm.xlu0 %135, %v128
    %v137 = vpop.permute.xlu0 %136
    %v139 = vmul.f32 %v125, %v132
    %v140 = vmul.f32 %v126, %v137
    %v141 = vsel %vm46, %v140, 0.0
    %v142 = vadd.f32 %v139, %v141
    %v143 = vrot.slane %v142, 4
    %v144 = vadd.f32 %v142, %v143
    %v145 = vrot.slane %v144, 2
    %v146 = vadd.f32 %v144, %v145
    %v147 = vrot.slane %v146, 1
    %v148 = vadd.f32 %v146, %v147
    %v149 = vld [vmem:[#allocation2] sm:$0x1]
    %151 = vset.pattern.permute.xlu0 0
    %152 = vperm.xlu0 %151, %v149
    %v153 = vpop.permute.xlu0 %152
    %v155 = vlaneseq
    %v156 = vshrl.u32 %v155, 7
    %v157 = vsub.s32 0, %v156
    %v158 = vrot.slane %v153, %v157
    %v159 = vadd.f32 %v148, %v158
    %160 = vst [vmem:[#allocation3] sm:$0x1] %v159
    // Predicated region
    $region22: #{tpu_custom_call.1} parent=1 // pred_check
      _
    $region23: #{tpu_custom_call.1} parent=1 // pred_check_branch
      %162 = sbr.rel (0) target = $region25
    $region24: #{tpu_custom_call.1} parent=1 // pred_region
      %s164 = ssub.s32 16, 16
      %165 = vsyncadd [#allocation4], %s164
      %s167 = sshll.u32 [#allocation3], 4
      %s168 = int_to_ptr.vmem [resolvable:$true] %s167
      %170 = dma.vmem_to_hbm [thread:$0]  %s168, 16, %s5, [#allocation4]
    $region25: #{tpu_custom_call.1} parent=1 // pred_fallthru
      _
    // Predicated region
    $region26: #{tpu_custom_call.1} parent=1 // pred_check
      _
    $region27: #{tpu_custom_call.1} parent=1 // pred_check_branch
      %172 = sbr.rel (0) target = $region29
    $region28: #{tpu_custom_call.1} parent=1 // pred_region
      %173 = dma.done [#allocation4], 16
    $region29: #{tpu_custom_call.1} parent=1 // pred_fallthru
      _
    %174 = vsyncpa [#allocation4], 1

</llo_original>
